<compile_context>
chip_gen: v7x
topology: tpu7x:2x2x1
jax: 0.10.0
libtpu: 0.0.40
codegen_flags: <defaults>
</compile_context>

<pallas_src>
import functools

import numpy as np
import jax
import jax.numpy as jnp
from jax.experimental import pallas as pl
from jax.experimental.pallas import tpu as pltpu

_LANE = 128
_SUBLANE = 8
# Planned VMEM bytes for input double-buffers + in-kernel f32 upcast temps.
# Conservative enough for v5e's 16 MiB scoped default once the limit is raised.
_VMEM_BUDGET = 16 * 1024 * 1024


def _round_up(x: int, m: int) -> int:
    return (x + m - 1) // m * m


def _plan(ws, n_reduces):
    """Static per-layer plan: (start_chunk, n_chunks, keep, red, rows_per_chunk)."""
    n = len(ws)
    keeps, reds, row_costs, full_costs = [], [], [], []
    for w, nr in zip(ws, n_reduces):
        keep = int(np.prod(w.shape[: w.ndim - nr], dtype=np.int64))
        red = int(np.prod(w.shape[w.ndim - nr:], dtype=np.int64))
        itemsize = np.dtype(w.dtype).itemsize
        lanes = _round_up(red, _LANE)                 # VMEM lane padding of the block
        row = 2 * lanes * itemsize                    # double-buffered input rows
        if np.dtype(w.dtype) != np.dtype(np.float32):
            row += lanes * 4                          # in-kernel f32 upcast temp
        keeps.append(keep)
        reds.append(red)
        row_costs.append(row)
        full_costs.append(_round_up(keep, _SUBLANE) * row)

    # Fair-share budgeting; small layers take their full footprint, big layers
    # split the remainder (per_big >= fair by construction).
    fair = max(_VMEM_BUDGET // n, _SUBLANE * _LANE * 4)
    small_total = sum(f for f in full_costs if f <= fair)
    n_big = sum(1 for f in full_costs if f > fair)
    per_big = ((_VMEM_BUDGET - small_total) // n_big) if n_big else 0

    metas, start = [], 0
    for keep, red, row, full in zip(keeps, reds, row_costs, full_costs):
        cap = full if full <= fair else max(per_big, fair)
        if full <= cap:
            rows, nchunks = keep, 1                   # whole layer in one block
        else:
            rows = max(_SUBLANE, (cap // row) // _SUBLANE * _SUBLANE)
            nchunks = -(-keep // rows)
        metas.append((start, nchunks, keep, red, rows))
        start += nchunks

    # v7x megacore: a 1-step grid idles one TensorCore; split the sole layer
    # into two row-chunks when it has enough rows.
    if start == 1 and keeps[0] >= 2 * _SUBLANE:
        keep, red = keeps[0], reds[0]
        rows = _round_up(-(-keep // 2), _SUBLANE)
        nchunks = -(-keep // rows)
        metas = [(0, nchunks, keep, red, rows)]
        start = nchunks

    return metas, start


def _make_kernel(metas):
    n_layers = len(metas)

    def kernel(*refs):
        layer_refs, out_ref = refs[:n_layers], refs[n_layers]
        i = pl.program_id(0)
        for ref, (start, nchunks, keep, red, rows) in zip(layer_refs, metas):

            def contribution(ref=ref, start=start, nchunks=nchunks,
                             keep=keep, rows=rows):
                # (rows, red) native-layout block; upcast on the VMEM tile.
                x = ref[...].astype(jnp.float32)
                s = jnp.sum(x, axis=-1, keepdims=True)          # (rows, 1) lane reduce
                if nchunks == 1:
                    sq = s * s                                   # all rows valid
                else:
                    row0 = (i - start) * rows
                    rid = row0 + jax.lax.broadcasted_iota(jnp.int32, (rows, 1), 0)
                    sq = jnp.where(rid < keep, s * s, 0.0)       # mask ragged tail
                partial = jnp.sum(sq, axis=0, keepdims=True) * (1.0 / keep)  # (1,1)
                out_ref[...] = jnp.broadcast_to(partial.reshape(1, 1, 1),
                                                out_ref.shape)

            # Exactly one layer owns grid step i; chunk ranges partition the grid.
            pl.when((i >= start) & (i < start + nchunks))(contribution)

    return kernel


@functools.partial(jax.jit, static_argnums=(1,))
def _wavelet_loss_fused(ws, n_reduces, weight_loss):
    metas, total_chunks = _plan(ws, n_reduces)

    # Contiguous dim-merge only — no transpose / pad / concat, zero prep traffic.
    ws2d = [jnp.reshape(w, (m[2], m[3])) for w, m in zip(ws, metas)]

    in_specs = [
        pl.BlockSpec(
            (rows, red),
            # Clamped index: while a layer is idle its block index is constant,
            # so Pallas skips the DMA; while active it walks its row-chunks.
            lambda i, s=start, c=nchunks: (jnp.clip(i - s, 0, c - 1), 0))
        for (start, nchunks, keep, red, rows) in metas
    ]

    per_chunk = pl.pallas_call(
        _make_kernel(metas),
        out_shape=jax.ShapeDtypeStruct((total_chunks, _SUBLANE, _LANE), jnp.float32),
        grid=(total_chunks,),
        in_specs=in_specs,
        out_specs=pl.BlockSpec((1, _SUBLANE, _LANE), lambda i: (i, 0, 0)),
        compiler_params=pltpu.CompilerParams(
            dimension_semantics=("parallel",),          # no cross-step dependency
            vmem_limit_bytes=32 * 1024 * 1024),
    )(*ws2d)

    # Tiny final reduce over per-chunk partials done by XLA.
    return weight_loss * jnp.sum(per_chunk[:, 0, 0])


def wavelet_loss(layers, weight_loss: float = 10.0) -> jax.Array:
    """layers: list of (weights, kind) with kind in {"GConvRdG", "GConvGG"}."""
    ws, n_reduces = [], []
    for w, kind in layers:
        if w.shape[-1] == 1:                 # skipped exactly like the PyTorch module
            continue
        if kind == "GConvRdG":
            nr = 1                            # dim = -1
        elif kind == "GConvGG":
            nr = 2                            # dims = (-2, -1)
        else:
            continue
        ws.append(w)
        n_reduces.append(nr)
    if not ws:                                # parity with torch: loss stays 0.0
        return jnp.float32(0.0)
    return _wavelet_loss_fused(tuple(ws), tuple(n_reduces), jnp.float32(weight_loss))


def _reference_loss(layers, weight_loss: float = 10.0) -> jax.Array:
    """Plain-JAX reference mirroring the PyTorch forward."""
    loss = jnp.float32(0.0)
    for w, kind in layers:
        if w.shape[-1] == 1:
            continue
        if kind not in ("GConvRdG", "GConvGG"):
            continue
        axes = (-1,) if kind == "GConvRdG" else (-2, -1)
        s = jnp.sum(jnp.asarray(w, jnp.float32), axis=axes)
        loss = loss + jnp.mean(s * s)
    return jnp.float32(weight_loss) * loss


if __name__ == "__main__":
    key = jax.random.PRNGKey(0)
    k0, k1, k2, k3, k4 = jax.random.split(key, 5)

    # Synthetic "model" parameters (deterministic init, shapes as the eerie
    # GConv layers would produce them):
    #   GConvRdG.weights: (out_ch, in_ch, kernel)          -> reduce dim -1
    #   GConvGG.weights : (out_ch, in_ch, n_trafo, kernel) -> reduce dims (-2,-1)
    layers = [
        (jax.random.normal(k0, (8, 4, 5), dtype=jnp.float32), "GConvRdG"),
        (jax.random.normal(k1, (16, 8, 9), dtype=jnp.float32), "GConvRdG"),
        (jax.random.normal(k2, (8, 8, 3, 5), dtype=jnp.float32), "GConvGG"),
        # bf16 layer stays bf16 in HBM (no slab-wide dtype promotion)
        (jax.random.normal(k3, (16, 8, 3, 9), dtype=jnp.bfloat16), "GConvGG"),
        # kernel size 1 -> skipped by the loss, exactly like the torch module
        (jax.random.normal(k4, (8, 4, 1), dtype=jnp.float32), "GConvRdG"),
    ]

    loss = wavelet_loss(layers, weight_loss=10.0)
    jax.block_until_ready(loss)

    ref = _reference_loss(layers, weight_loss=10.0)
    np.testing.assert_allclose(np.asarray(loss), np.asarray(ref),
                               rtol=1e-5, atol=1e-4)
    print("KERNEL_OK")
</pallas_src>

<mosaic_0001>
module attributes {stable_mosaic.version = 11 : i64} {
  func.func @kernel(%arg0: i32, %arg1: memref<32x5xf32, #tpu.memory_space<vmem>>, %arg2: memref<128x9xf32, #tpu.memory_space<vmem>>, %arg3: memref<64x15xf32, #tpu.memory_space<vmem>>, %arg4: memref<128x27xbf16, #tpu.memory_space<vmem>>, %arg5: memref<1x8x128xf32, #tpu.memory_space<vmem>>) attributes {dimension_semantics = [#tpu.dimension_semantics<parallel>], iteration_bounds = array<i64: 4>, scalar_prefetch = 0 : i64, scratch_operands = 0 : i64, tpu.core_type = #tpu.core_type<tc>, window_params = [{transform_indices = @transform_0, window_bounds = array<i64: 32, 5>}, {transform_indices = @transform_1, window_bounds = array<i64: 128, 9>}, {transform_indices = @transform_2, window_bounds = array<i64: 64, 15>}, {transform_indices = @transform_3, window_bounds = array<i64: 128, 27>}, {transform_indices = @transform_4, window_bounds = array<i64: 1, 8, 128>}]} {
    %c0_i32 = arith.constant 0 : i32
    %0 = arith.cmpi sge, %arg0, %c0_i32 : i32
    %c1_i32 = arith.constant 1 : i32
    %1 = arith.cmpi slt, %arg0, %c1_i32 : i32
    %2 = arith.andi %0, %1 : i1
    %3 = arith.extui %2 : i1 to i32
    %c0_i32_0 = arith.constant 0 : i32
    %4 = arith.cmpi ne, %3, %c0_i32_0 : i32
    scf.if %4 {
      %c0 = arith.constant 0 : index
      %c0_7 = arith.constant 0 : index
      %20 = vector.load %arg1[%c0, %c0_7] : memref<32x5xf32, #tpu.memory_space<vmem>>, vector<32x5xf32>
      %cst = arith.constant dense<0.000000e+00> : vector<32xf32>
      %21 = vector.multi_reduction <add>, %20, %cst [1] : vector<32x5xf32> to vector<32xf32>
      %22 = vector.shape_cast %21 : vector<32xf32> to vector<32x1xf32>
      %23 = arith.mulf %22, %22 : vector<32x1xf32>
      %cst_8 = arith.constant dense<0.000000e+00> : vector<1xf32>
      %24 = vector.multi_reduction <add>, %23, %cst_8 [0] : vector<32x1xf32> to vector<1xf32>
      %25 = vector.shape_cast %24 : vector<1xf32> to vector<1x1xf32>
      %cst_9 = arith.constant 3.125000e-02 : f32
      %26 = vector.broadcast %cst_9 : f32 to vector<1x1xf32>
      %27 = arith.mulf %25, %26 : vector<1x1xf32>
      %28 = vector.shape_cast %27 : vector<1x1xf32> to vector<1x1x1xf32>
      %29 = vector.shape_cast %28 : vector<1x1x1xf32> to vector<1x1x1xf32>
      %30 = vector.broadcast %29 : vector<1x1x1xf32> to vector<1x8x128xf32>
      %c0_10 = arith.constant 0 : index
      %c0_11 = arith.constant 0 : index
      %c0_12 = arith.constant 0 : index
      %31 = vector.load %arg5[%c0_10, %c0_11, %c0_12] : memref<1x8x128xf32, #tpu.memory_space<vmem>>, vector<1x8x128xf32>
      tpu.vector_store %arg5[%c0_10, %c0_11, %c0_12], %30 {strides = array<i32>} : memref<1x8x128xf32, #tpu.memory_space<vmem>>, vector<1x8x128xf32>,
    } else {
    }
    %c1_i32_1 = arith.constant 1 : i32
    %5 = arith.cmpi sge, %arg0, %c1_i32_1 : i32
    %c2_i32 = arith.constant 2 : i32
    %6 = arith.cmpi slt, %arg0, %c2_i32 : i32
    %7 = arith.andi %5, %6 : i1
    %8 = arith.extui %7 : i1 to i32
    %c0_i32_2 = arith.constant 0 : i32
    %9 = arith.cmpi ne, %8, %c0_i32_2 : i32
    scf.if %9 {
      %c0 = arith.constant 0 : index
      %c0_7 = arith.constant 0 : index
      %20 = vector.load %arg2[%c0, %c0_7] : memref<128x9xf32, #tpu.memory_space<vmem>>, vector<128x9xf32>
      %cst = arith.constant dense<0.000000e+00> : vector<128xf32>
      %21 = vector.multi_reduction <add>, %20, %cst [1] : vector<128x9xf32> to vector<128xf32>
      %22 = vector.shape_cast %21 : vector<128xf32> to vector<128x1xf32>
      %23 = arith.mulf %22, %22 : vector<128x1xf32>
      %cst_8 = arith.constant dense<0.000000e+00> : vector<1xf32>
      %24 = vector.multi_reduction <add>, %23, %cst_8 [0] : vector<128x1xf32> to vector<1xf32>
      %25 = vector.shape_cast %24 : vector<1xf32> to vector<1x1xf32>
      %cst_9 = arith.constant 7.812500e-03 : f32
      %26 = vector.broadcast %cst_9 : f32 to vector<1x1xf32>
      %27 = arith.mulf %25, %26 : vector<1x1xf32>
      %28 = vector.shape_cast %27 : vector<1x1xf32> to vector<1x1x1xf32>
      %29 = vector.shape_cast %28 : vector<1x1x1xf32> to vector<1x1x1xf32>
      %30 = vector.broadcast %29 : vector<1x1x1xf32> to vector<1x8x128xf32>
      %c0_10 = arith.constant 0 : index
      %c0_11 = arith.constant 0 : index
      %c0_12 = arith.constant 0 : index
      %31 = vector.load %arg5[%c0_10, %c0_11, %c0_12] : memref<1x8x128xf32, #tpu.memory_space<vmem>>, vector<1x8x128xf32>
      tpu.vector_store %arg5[%c0_10, %c0_11, %c0_12], %30 {strides = array<i32>} : memref<1x8x128xf32, #tpu.memory_space<vmem>>, vector<1x8x128xf32>,
    } else {
    }
    %c2_i32_3 = arith.constant 2 : i32
    %10 = arith.cmpi sge, %arg0, %c2_i32_3 : i32
    %c3_i32 = arith.constant 3 : i32
    %11 = arith.cmpi slt, %arg0, %c3_i32 : i32
    %12 = arith.andi %10, %11 : i1
    %13 = arith.extui %12 : i1 to i32
    %c0_i32_4 = arith.constant 0 : i32
    %14 = arith.cmpi ne, %13, %c0_i32_4 : i32
    scf.if %14 {
      %c0 = arith.constant 0 : index
      %c0_7 = arith.constant 0 : index
      %20 = vector.load %arg3[%c0, %c0_7] : memref<64x15xf32, #tpu.memory_space<vmem>>, vector<64x15xf32>
      %cst = arith.constant dense<0.000000e+00> : vector<64xf32>
      %21 = vector.multi_reduction <add>, %20, %cst [1] : vector<64x15xf32> to vector<64xf32>
      %22 = vector.shape_cast %21 : vector<64xf32> to vector<64x1xf32>
      %23 = arith.mulf %22, %22 : vector<64x1xf32>
      %cst_8 = arith.constant dense<0.000000e+00> : vector<1xf32>
      %24 = vector.multi_reduction <add>, %23, %cst_8 [0] : vector<64x1xf32> to vector<1xf32>
      %25 = vector.shape_cast %24 : vector<1xf32> to vector<1x1xf32>
      %cst_9 = arith.constant 1.562500e-02 : f32
      %26 = vector.broadcast %cst_9 : f32 to vector<1x1xf32>
      %27 = arith.mulf %25, %26 : vector<1x1xf32>
      %28 = vector.shape_cast %27 : vector<1x1xf32> to vector<1x1x1xf32>
      %29 = vector.shape_cast %28 : vector<1x1x1xf32> to vector<1x1x1xf32>
      %30 = vector.broadcast %29 : vector<1x1x1xf32> to vector<1x8x128xf32>
      %c0_10 = arith.constant 0 : index
      %c0_11 = arith.constant 0 : index
      %c0_12 = arith.constant 0 : index
      %31 = vector.load %arg5[%c0_10, %c0_11, %c0_12] : memref<1x8x128xf32, #tpu.memory_space<vmem>>, vector<1x8x128xf32>
      tpu.vector_store %arg5[%c0_10, %c0_11, %c0_12], %30 {strides = array<i32>} : memref<1x8x128xf32, #tpu.memory_space<vmem>>, vector<1x8x128xf32>,
    } else {
    }
    %c3_i32_5 = arith.constant 3 : i32
    %15 = arith.cmpi sge, %arg0, %c3_i32_5 : i32
    %c4_i32 = arith.constant 4 : i32
    %16 = arith.cmpi slt, %arg0, %c4_i32 : i32
    %17 = arith.andi %15, %16 : i1
    %18 = arith.extui %17 : i1 to i32
    %c0_i32_6 = arith.constant 0 : i32
    %19 = arith.cmpi ne, %18, %c0_i32_6 : i32
    scf.if %19 {
      %c0 = arith.constant 0 : index
      %c0_7 = arith.constant 0 : index
      %20 = vector.load %arg4[%c0, %c0_7] : memref<128x27xbf16, #tpu.memory_space<vmem>>, vector<128x27xbf16>
      %21 = arith.extf %20 : vector<128x27xbf16> to vector<128x27xf32>
      %cst = arith.constant dense<0.000000e+00> : vector<128xf32>
      %22 = vector.multi_reduction <add>, %21, %cst [1] : vector<128x27xf32> to vector<128xf32>
      %23 = vector.shape_cast %22 : vector<128xf32> to vector<128x1xf32>
      %24 = arith.mulf %23, %23 : vector<128x1xf32>
      %cst_8 = arith.constant dense<0.000000e+00> : vector<1xf32>
      %25 = vector.multi_reduction <add>, %24, %cst_8 [0] : vector<128x1xf32> to vector<1xf32>
      %26 = vector.shape_cast %25 : vector<1xf32> to vector<1x1xf32>
      %cst_9 = arith.constant 7.812500e-03 : f32
      %27 = vector.broadcast %cst_9 : f32 to vector<1x1xf32>
      %28 = arith.mulf %26, %27 : vector<1x1xf32>
      %29 = vector.shape_cast %28 : vector<1x1xf32> to vector<1x1x1xf32>
      %30 = vector.shape_cast %29 : vector<1x1x1xf32> to vector<1x1x1xf32>
      %31 = vector.broadcast %30 : vector<1x1x1xf32> to vector<1x8x128xf32>
      %c0_10 = arith.constant 0 : index
      %c0_11 = arith.constant 0 : index
      %c0_12 = arith.constant 0 : index
      %32 = vector.load %arg5[%c0_10, %c0_11, %c0_12] : memref<1x8x128xf32, #tpu.memory_space<vmem>>, vector<1x8x128xf32>
      tpu.vector_store %arg5[%c0_10, %c0_11, %c0_12], %31 {strides = array<i32>} : memref<1x8x128xf32, #tpu.memory_space<vmem>>, vector<1x8x128xf32>,
    } else {
    }
    return
  }
  func.func @transform_0(%arg0: i32) -> (i32, i32) {
    %c0_i32 = arith.constant 0 : i32
    %0 = arith.subi %arg0, %c0_i32 : i32
    %c0_i32_0 = arith.constant 0 : i32
    %c0_i32_1 = arith.constant 0 : i32
    %1 = arith.maxsi %c0_i32_0, %0 : i32
    %2 = arith.minsi %c0_i32_1, %1 : i32
    %c0_i32_2 = arith.constant 0 : i32
    %c0_i32_3 = arith.constant 0 : i32
    return %2, %c0_i32_2 : i32, i32
  }
  func.func @transform_1(%arg0: i32) -> (i32, i32) {
    %c1_i32 = arith.constant 1 : i32
    %0 = arith.subi %arg0, %c1_i32 : i32
    %c0_i32 = arith.constant 0 : i32
    %c0_i32_0 = arith.constant 0 : i32
    %1 = arith.maxsi %c0_i32, %0 : i32
    %2 = arith.minsi %c0_i32_0, %1 : i32
    %c0_i32_1 = arith.constant 0 : i32
    %c0_i32_2 = arith.constant 0 : i32
    return %2, %c0_i32_1 : i32, i32
  }
  func.func @transform_2(%arg0: i32) -> (i32, i32) {
    %c2_i32 = arith.constant 2 : i32
    %0 = arith.subi %arg0, %c2_i32 : i32
    %c0_i32 = arith.constant 0 : i32
    %c0_i32_0 = arith.constant 0 : i32
    %1 = arith.maxsi %c0_i32, %0 : i32
    %2 = arith.minsi %c0_i32_0, %1 : i32
    %c0_i32_1 = arith.constant 0 : i32
    %c0_i32_2 = arith.constant 0 : i32
    return %2, %c0_i32_1 : i32, i32
  }
  func.func @transform_3(%arg0: i32) -> (i32, i32) {
    %c3_i32 = arith.constant 3 : i32
    %0 = arith.subi %arg0, %c3_i32 : i32
    %c0_i32 = arith.constant 0 : i32
    %c0_i32_0 = arith.constant 0 : i32
    %1 = arith.maxsi %c0_i32, %0 : i32
    %2 = arith.minsi %c0_i32_0, %1 : i32
    %c0_i32_1 = arith.constant 0 : i32
    %c0_i32_2 = arith.constant 0 : i32
    return %2, %c0_i32_1 : i32, i32
  }
  func.func @transform_4(%arg0: i32) -> (i32, i32, i32) {
    %c0_i32 = arith.constant 0 : i32
    %c0_i32_0 = arith.constant 0 : i32
    %c0_i32_1 = arith.constant 0 : i32
    return %arg0, %c0_i32, %c0_i32_0 : i32, i32, i32
  }
}

</mosaic_0001>

<llo_original>
// kernel: _wavelet_loss_fused.1
$region0: #{_wavelet_loss_fused.1}
  #allocation0 [shape = 'u32[]', space=smem, size = 0x4, offset = 0x4, fixed_abs, tag = 'smem constant byte address 0x4 - core index']
  #allocation1 [shape = 'u32[144,128]{1,0:T(1,128)}', space=vmem, size = 0x12000, scoped, tag = 'internal scratch']
  %s0 = inlined_call_operand.vmem [shape: f32[32,5], index: 0, kind: input, shape index: {}]
  %s1 = inlined_call_operand.vmem [shape: f32[128,9], index: 1, kind: input, shape index: {}]
  %s2 = inlined_call_operand.vmem [shape: f32[64,15], index: 2, kind: input, shape index: {}]
  %s3 = inlined_call_operand.vmem [shape: bf16[128,27], index: 3, kind: input, shape index: {}]
  %s4 = inlined_call_operand.vmem [shape: f32[4,8,128], index: 4, kind: output, shape index: {}]
  %s5 = sld [smem:[#allocation0]]
  $region65: #{_wavelet_loss_fused.1} parent=0
    _
  %s7 = ssub.s32 1, %s5
  %s8 = scalar_select 0, %s7, %s5
  loop: start=0, step=1, limit=6
  $region2: #{_wavelet_loss_fused.1} parent=0 // loop_pre_header
    _
  $region3: #{_wavelet_loss_fused.1} parent=0 // loop_header
    %s10 = sphi 0, %s14
    %p11 = scmp.ge.s32.totalorder %s10, 6
    %s28 = sphi 0, %s30
    %s31 = sphi 0, %s28
    %s32 = sphi 0, %s31
    %s48 = sphi 0, %s32
    %s64 = sphi 0, %s66
    %s67 = sphi 0, %s64
    %s68 = sphi 0, %s67
    %s84 = sphi 0, %s68
    %s100 = sphi 0, %s102
    %s103 = sphi 0, %s100
    %s104 = sphi 0, %s103
    %s120 = sphi 0, %s104
    %s136 = sphi 0, %s138
    %s139 = sphi 0, %s136
    %s140 = sphi 0, %s139
    %s156 = sphi 0, %s140
    %s162 = sphi 0, %s164
    %s165 = sphi 0, %s162
    %s166 = sphi 0, %s165
    %s182 = sphi 0, %s166
  $region4: #{_wavelet_loss_fused.1} parent=0 // loop_header_branch
    %13 = sbr.rel (%p11) target = $region8
  $region5: #{_wavelet_loss_fused.1} parent=0 // loop_body
    %s15 = ssub.s32 %s10, 1
    %s16 = ssub.s32 %s10, 2
    %s17 = sadd.s32 %s10, 1
    %p18 = scmp.gt.s32.totalorder %s10, 0
    %s19 = scalar_select %p18, %s10, 0
    %p20 = scmp.lt.s32.totalorder %s19, 0
    %s21 = scalar_select %p20, %s19, 0
    %p22 = scmp.gt.s32.totalorder %s17, 0
    %s23 = scalar_select %p22, %s17, 0
    %p24 = scmp.lt.s32.totalorder %s23, 0
    %s25 = scalar_select %p24, %s23, 0
    %s26 = ssub.s32 %s21, %s25
    %p27 = scmp.eq.s32.totalorder %s26, 0
    %s29 = sadd.s32 %s28, 1
    %s30 = scalar_select %p27, %s28, %s29
    %p33 = pneg %p27
    %p34 = scmp.eq.s32.totalorder %s10, 3
    %p35 = por %p33, %p34
    %p36 = scmp.ne.s32.totalorder %s28, %s31
    %p37 = scmp.eq.s32.totalorder %s10, 0
    %p38 = por %p36, %p37
    %p39 = scmp.ne.s32.totalorder %s28, %s31
    %p40 = scmp.eq.s32.totalorder %s15, 3
    %p41 = por %p39, %p40
    %p42 = scmp.ne.s32.totalorder %s31, %s32
    %p43 = scmp.eq.s32.totalorder %s15, 0
    %p44 = por %p42, %p43
    %p45 = scmp.ne.s32.totalorder %s31, %s32
    %p46 = scmp.eq.s32.totalorder %s16, 3
    %p47 = por %p45, %p46
    %p49 = scmp.ne.s32.totalorder %s32, %s48
    %p50 = scmp.eq.s32.totalorder %s16, 0
    %p51 = por %p49, %p50
    %s52 = ssub.s32 %s10, 1
    %p53 = scmp.gt.s32.totalorder %s52, 0
    %s54 = scalar_select %p53, %s52, 0
    %p55 = scmp.lt.s32.totalorder %s54, 0
    %s56 = scalar_select %p55, %s54, 0
    %s57 = ssub.s32 %s17, 1
    %p58 = scmp.gt.s32.totalorder %s57, 0
    %s59 = scalar_select %p58, %s57, 0
    %p60 = scmp.lt.s32.totalorder %s59, 0
    %s61 = scalar_select %p60, %s59, 0
    %s62 = ssub.s32 %s56, %s61
    %p63 = scmp.eq.s32.totalorder %s62, 0
    %s65 = sadd.s32 %s64, 1
    %s66 = scalar_select %p63, %s64, %s65
    %p69 = pneg %p63
    %p70 = scmp.eq.s32.totalorder %s10, 3
    %p71 = por %p69, %p70
    %p72 = scmp.ne.s32.totalorder %s64, %s67
    %p73 = scmp.eq.s32.totalorder %s10, 0
    %p74 = por %p72, %p73
    %p75 = scmp.ne.s32.totalorder %s64, %s67
    %p76 = scmp.eq.s32.totalorder %s15, 3
    %p77 = por %p75, %p76
    %p78 = scmp.ne.s32.totalorder %s67, %s68
    %p79 = scmp.eq.s32.totalorder %s15, 0
    %p80 = por %p78, %p79
    %p81 = scmp.ne.s32.totalorder %s67, %s68
    %p82 = scmp.eq.s32.totalorder %s16, 3
    %p83 = por %p81, %p82
    %p85 = scmp.ne.s32.totalorder %s68, %s84
    %p86 = scmp.eq.s32.totalorder %s16, 0
    %p87 = por %p85, %p86
    %s88 = ssub.s32 %s10, 2
    %p89 = scmp.gt.s32.totalorder %s88, 0
    %s90 = scalar_select %p89, %s88, 0
    %p91 = scmp.lt.s32.totalorder %s90, 0
    %s92 = scalar_select %p91, %s90, 0
    %s93 = ssub.s32 %s17, 2
    %p94 = scmp.gt.s32.totalorder %s93, 0
    %s95 = scalar_select %p94, %s93, 0
    %p96 = scmp.lt.s32.totalorder %s95, 0
    %s97 = scalar_select %p96, %s95, 0
    %s98 = ssub.s32 %s92, %s97
    %p99 = scmp.eq.s32.totalorder %s98, 0
    %s101 = sadd.s32 %s100, 1
    %s102 = scalar_select %p99, %s100, %s101
    %p105 = pneg %p99
    %p106 = scmp.eq.s32.totalorder %s10, 3
    %p107 = por %p105, %p106
    %p108 = scmp.ne.s32.totalorder %s100, %s103
    %p109 = scmp.eq.s32.totalorder %s10, 0
    %p110 = por %p108, %p109
    %p111 = scmp.ne.s32.totalorder %s100, %s103
    %p112 = scmp.eq.s32.totalorder %s15, 3
    %p113 = por %p111, %p112
    %p114 = scmp.ne.s32.totalorder %s103, %s104
    %p115 = scmp.eq.s32.totalorder %s15, 0
    %p116 = por %p114, %p115
    %p117 = scmp.ne.s32.totalorder %s103, %s104
    %p118 = scmp.eq.s32.totalorder %s16, 3
    %p119 = por %p117, %p118
    %p121 = scmp.ne.s32.totalorder %s104, %s120
    %p122 = scmp.eq.s32.totalorder %s16, 0
    %p123 = por %p121, %p122
    %s124 = ssub.s32 %s10, 3
    %p125 = scmp.gt.s32.totalorder %s124, 0
    %s126 = scalar_select %p125, %s124, 0
    %p127 = scmp.lt.s32.totalorder %s126, 0
    %s128 = scalar_select %p127, %s126, 0
    %s129 = ssub.s32 %s17, 3
    %p130 = scmp.gt.s32.totalorder %s129, 0
    %s131 = scalar_select %p130, %s129, 0
    %p132 = scmp.lt.s32.totalorder %s131, 0
    %s133 = scalar_select %p132, %s131, 0
    %s134 = ssub.s32 %s128, %s133
    %p135 = scmp.eq.s32.totalorder %s134, 0
    %s137 = sadd.s32 %s136, 1
    %s138 = scalar_select %p135, %s136, %s137
    %p141 = pneg %p135
    %p142 = scmp.eq.s32.totalorder %s10, 3
    %p143 = por %p141, %p142
    %p144 = scmp.ne.s32.totalorder %s136, %s139
    %p145 = scmp.eq.s32.totalorder %s10, 0
    %p146 = por %p144, %p145
    %p147 = scmp.ne.s32.totalorder %s136, %s139
    %p148 = scmp.eq.s32.totalorder %s15, 3
    %p149 = por %p147, %p148
    %p150 = scmp.ne.s32.totalorder %s139, %s140
    %p151 = scmp.eq.s32.totalorder %s15, 0
    %p152 = por %p150, %p151
    %p153 = scmp.ne.s32.totalorder %s139, %s140
    %p154 = scmp.eq.s32.totalorder %s16, 3
    %p155 = por %p153, %p154
    %p157 = scmp.ne.s32.totalorder %s140, %s156
    %p158 = scmp.eq.s32.totalorder %s16, 0
    %p159 = por %p157, %p158
    %s160 = ssub.s32 %s10, %s17
    %p161 = scmp.eq.s32.totalorder %s160, 0
    %s163 = sadd.s32 %s162, 1
    %s164 = scalar_select %p161, %s162, %s163
    %p167 = pneg %p161
    %p168 = scmp.eq.s32.totalorder %s10, 3
    %p169 = por %p167, %p168
    %p170 = scmp.ne.s32.totalorder %s162, %s165
    %p171 = scmp.eq.s32.totalorder %s10, 0
    %p172 = por %p170, %p171
    %p173 = scmp.ne.s32.totalorder %s162, %s165
    %p174 = scmp.eq.s32.totalorder %s15, 3
    %p175 = por %p173, %p174
    %p176 = scmp.ne.s32.totalorder %s165, %s166
    %p177 = scmp.eq.s32.totalorder %s15, 0
    %p178 = por %p176, %p177
    %p179 = scmp.ne.s32.totalorder %s165, %s166
    %p180 = scmp.eq.s32.totalorder %s16, 3
    %p181 = por %p179, %p180
    %p183 = scmp.ne.s32.totalorder %s166, %s182
    %p184 = scmp.eq.s32.totalorder %s16, 0
    %p185 = por %p183, %p184
    %p186 = scmp.le.s32.totalorder 1, %s10
    %p187 = scmp.lt.s32.totalorder %s10, 5
    %p188 = pnand %p186, %p187
    %p189 = pneg %p188
    // Predicated region
    $region9: #{_wavelet_loss_fused.1} parent=5 // pred_check
      _
    $region10: #{_wavelet_loss_fused.1} parent=5 // pred_check_branch
      %191 = sbr.rel (%p188) target = $region12
    $region11: #{_wavelet_loss_fused.1} parent=5 // pred_region
      %s192 = ssub.s32 %s10, 1
    $region12: #{_wavelet_loss_fused.1} parent=5 // pred_fallthru
      _
    %p193 = scmp.lt.s32.totalorder %s10, 4
    // Predicated region
    $region13: #{_wavelet_loss_fused.1} parent=5 // pred_check
      %p194 = pneg %p193
    $region14: #{_wavelet_loss_fused.1} parent=5 // pred_check_branch
      %196 = sbr.rel (%p194) target = $region16
    $region15: #{_wavelet_loss_fused.1} parent=5 // pred_region
      // Predicated region
      $region17: #{_wavelet_loss_fused.1} parent=15 // pred_check
        %p197 = pneg %p38
      $region18: #{_wavelet_loss_fused.1} parent=15 // pred_check_branch
        %199 = sbr.rel (%p197) target = $region20
      $region19: #{_wavelet_loss_fused.1} parent=15 // pred_region
        %p200 = scmp.gt.s32.totalorder %s10, 0
        %s201 = scalar_select %p200, %s10, 0
        %p202 = scmp.lt.s32.totalorder %s201, 0
        %s203 = scalar_select %p202, %s201, 0
        %s204 = smul.u32 4, %s203
        %p205 = scmp.lt.s32.totalorder %s204, 3
        %s206 = scalar_select %p205, %s204, 3
        %s207 = smul.addr %s206, 8
        %s208 = scalar_lea.vmem %s0, %s207
        %p209 = scmp.gt.s32.totalorder %s10, 0
        %s210 = scalar_select %p209, %s10, 0
        %p211 = scmp.lt.s32.totalorder %s210, 0
        %s212 = scalar_select %p211, %s210, 0
        %s213 = smul.u32 4, %s212
      $region20: #{_wavelet_loss_fused.1} parent=15 // pred_fallthru
        _
      // Predicated region
      $region21: #{_wavelet_loss_fused.1} parent=15 // pred_check
        %p214 = pneg %p74
      $region22: #{_wavelet_loss_fused.1} parent=15 // pred_check_branch
        %216 = sbr.rel (%p214) target = $region24
      $region23: #{_wavelet_loss_fused.1} parent=15 // pred_region
        %s217 = ssub.s32 %s10, 1
        %p218 = scmp.gt.s32.totalorder %s217, 0
        %s219 = scalar_select %p218, %s217, 0
        %p220 = scmp.lt.s32.totalorder %s219, 0
        %s221 = scalar_select %p220, %s219, 0
        %s222 = smul.u32 16, %s221
        %p223 = scmp.lt.s32.totalorder %s222, 15
        %s224 = scalar_select %p223, %s222, 15
        %s225 = smul.addr %s224, 8
        %s226 = scalar_lea.vmem %s1, %s225
        %s227 = ssub.s32 %s10, 1
        %p228 = scmp.gt.s32.totalorder %s227, 0
        %s229 = scalar_select %p228, %s227, 0
        %p230 = scmp.lt.s32.totalorder %s229, 0
        %s231 = scalar_select %p230, %s229, 0
        %s232 = smul.u32 16, %s231
      $region24: #{_wavelet_loss_fused.1} parent=15 // pred_fallthru
        _
      // Predicated region
      $region25: #{_wavelet_loss_fused.1} parent=15 // pred_check
        %p233 = pneg %p110
      $region26: #{_wavelet_loss_fused.1} parent=15 // pred_check_branch
        %235 = sbr.rel (%p233) target = $region28
      $region27: #{_wavelet_loss_fused.1} parent=15 // pred_region
        %s236 = ssub.s32 %s10, 2
        %p237 = scmp.gt.s32.totalorder %s236, 0
        %s238 = scalar_select %p237, %s236, 0
        %p239 = scmp.lt.s32.totalorder %s238, 0
        %s240 = scalar_select %p239, %s238, 0
        %s241 = smul.u32 8, %s240
        %p242 = scmp.lt.s32.totalorder %s241, 7
        %s243 = scalar_select %p242, %s241, 7
        %s244 = smul.addr %s243, 8
        %s245 = scalar_lea.vmem %s2, %s244
        %s246 = ssub.s32 %s10, 2
        %p247 = scmp.gt.s32.totalorder %s246, 0
        %s248 = scalar_select %p247, %s246, 0
        %p249 = scmp.lt.s32.totalorder %s248, 0
        %s250 = scalar_select %p249, %s248, 0
        %s251 = smul.u32 8, %s250
      $region28: #{_wavelet_loss_fused.1} parent=15 // pred_fallthru
        _
      // Predicated region
      $region29: #{_wavelet_loss_fused.1} parent=15 // pred_check
        %p252 = pneg %p146
      $region30: #{_wavelet_loss_fused.1} parent=15 // pred_check_branch
        %254 = sbr.rel (%p252) target = $region32
      $region31: #{_wavelet_loss_fused.1} parent=15 // pred_region
        %s255 = ssub.s32 %s10, 3
        %p256 = scmp.gt.s32.totalorder %s255, 0
        %s257 = scalar_select %p256, %s255, 0
        %p258 = scmp.lt.s32.totalorder %s257, 0
        %s259 = scalar_select %p258, %s257, 0
        %s260 = smul.u32 16, %s259
        %p261 = scmp.lt.s32.totalorder %s260, 15
        %s262 = scalar_select %p261, %s260, 15
        %s263 = smul.addr %s262, 4
        %s264 = scalar_lea.vmem %s3, %s263
        %s265 = ssub.s32 %s10, 3
        %p266 = scmp.gt.s32.totalorder %s265, 0
        %s267 = scalar_select %p266, %s265, 0
        %p268 = scmp.lt.s32.totalorder %s267, 0
        %s269 = scalar_select %p268, %s267, 0
        %s270 = smul.u32 16, %s269
      $region32: #{_wavelet_loss_fused.1} parent=15 // pred_fallthru
        _
    $region16: #{_wavelet_loss_fused.1} parent=5 // pred_fallthru
      _
    %p271 = scmp.le.s32.totalorder 1, %s10
    %p272 = scmp.lt.s32.totalorder %s10, 5
    %p273 = pnand %p271, %p272
    %p274 = pneg %p273
    // Predicated region
    $region33: #{_wavelet_loss_fused.1} parent=5 // pred_check
      _
    $region34: #{_wavelet_loss_fused.1} parent=5 // pred_check_branch
      %276 = sbr.rel (%p273) target = $region36
    $region35: #{_wavelet_loss_fused.1} parent=5 // pred_region
      %s277 = ssub.s32 %s10, 1
      %p278 = scmp.gt.s32.totalorder %s15, 0
      %s279 = scalar_select %p278, %s15, 0
      %p280 = scmp.lt.s32.totalorder %s279, 0
      %s281 = scalar_select %p280, %s279, 0
      %s282 = smul.u32 4, %s281
      %p283 = scmp.lt.s32.totalorder %s282, 3
      %s284 = scalar_select %p283, %s282, 3
      %s285 = smul.addr %s284, 8
      %s286 = scalar_lea.vmem %s0, %s285
      %p287 = pneg %p44
      %p288 = pneg %p41
      %s289 = ssub.s32 %s15, 1
      %p290 = scmp.gt.s32.totalorder %s289, 0
      %s291 = scalar_select %p290, %s289, 0
      %p292 = scmp.lt.s32.totalorder %s291, 0
      %s293 = scalar_select %p292, %s291, 0
      %s294 = smul.u32 16, %s293
      %p295 = scmp.lt.s32.totalorder %s294, 15
      %s296 = scalar_select %p295, %s294, 15
      %s297 = smul.addr %s296, 8
      %s298 = scalar_lea.vmem %s1, %s297
      %p299 = pneg %p80
      %p300 = pneg %p77
      %s301 = ssub.s32 %s15, 2
      %p302 = scmp.gt.s32.totalorder %s301, 0
      %s303 = scalar_select %p302, %s301, 0
      %p304 = scmp.lt.s32.totalorder %s303, 0
      %s305 = scalar_select %p304, %s303, 0
      %s306 = smul.u32 8, %s305
      %p307 = scmp.lt.s32.totalorder %s306, 7
      %s308 = scalar_select %p307, %s306, 7
      %s309 = smul.addr %s308, 8
      %s310 = scalar_lea.vmem %s2, %s309
      %p311 = pneg %p116
      %p312 = pneg %p113
      %s313 = ssub.s32 %s15, 3
      %p314 = scmp.gt.s32.totalorder %s313, 0
      %s315 = scalar_select %p314, %s313, 0
      %p316 = scmp.lt.s32.totalorder %s315, 0
      %s317 = scalar_select %p316, %s315, 0
      %s318 = smul.u32 16, %s317
      %p319 = scmp.lt.s32.totalorder %s318, 15
      %s320 = scalar_select %p319, %s318, 15
      %s321 = smul.addr %s320, 4
      %s322 = scalar_lea.vmem %s3, %s321
      %p323 = pneg %p152
      %p324 = pneg %p149
      %p325 = pneg %p178
      %p326 = pneg %p175
      %p327 = scmp.lt.s32.totalorder %s15, 3
      %s328 = scalar_select %p327, %s15, 3
      %s329 = smul.addr %s328, 8
      %s330 = scalar_lea.vmem %s4, %s329
      %p331 = scmp.gt.s32.totalorder %s15, 0
      %s332 = scalar_select %p331, %s15, 0
      %p333 = scmp.lt.s32.totalorder %s332, 0
      %s334 = scalar_select %p333, %s332, 0
      %s335 = smul.u32 4, %s334
      %p336 = scmp.lt.s32.totalorder %s335, 3
      %s337 = scalar_select %p336, %s335, 3
      %s338 = smul.addr %s337, 8
      %s339 = scalar_lea.vmem %s0, %s338
      %p340 = scmp.gt.s32.totalorder %s15, 0
      %s341 = scalar_select %p340, %s15, 0
      %p342 = scmp.lt.s32.totalorder %s341, 0
      %s343 = scalar_select %p342, %s341, 0
      %s344 = smul.u32 4, %s343
      %s345 = ssub.s32 %s15, 1
      %p346 = scmp.gt.s32.totalorder %s345, 0
      %s347 = scalar_select %p346, %s345, 0
      %p348 = scmp.lt.s32.totalorder %s347, 0
      %s349 = scalar_select %p348, %s347, 0
      %s350 = smul.u32 16, %s349
      %p351 = scmp.lt.s32.totalorder %s350, 15
      %s352 = scalar_select %p351, %s350, 15
      %s353 = smul.addr %s352, 8
      %s354 = scalar_lea.vmem %s1, %s353
      %s355 = ssub.s32 %s15, 1
      %p356 = scmp.gt.s32.totalorder %s355, 0
      %s357 = scalar_select %p356, %s355, 0
      %p358 = scmp.lt.s32.totalorder %s357, 0
      %s359 = scalar_select %p358, %s357, 0
      %s360 = smul.u32 16, %s359
      %s361 = ssub.s32 %s15, 2
      %p362 = scmp.gt.s32.totalorder %s361, 0
      %s363 = scalar_select %p362, %s361, 0
      %p364 = scmp.lt.s32.totalorder %s363, 0
      %s365 = scalar_select %p364, %s363, 0
      %s366 = smul.u32 8, %s365
      %p367 = scmp.lt.s32.totalorder %s366, 7
      %s368 = scalar_select %p367, %s366, 7
      %s369 = smul.addr %s368, 8
      %s370 = scalar_lea.vmem %s2, %s369
      %s371 = ssub.s32 %s15, 2
      %p372 = scmp.gt.s32.totalorder %s371, 0
      %s373 = scalar_select %p372, %s371, 0
      %p374 = scmp.lt.s32.totalorder %s373, 0
      %s375 = scalar_select %p374, %s373, 0
      %s376 = smul.u32 8, %s375
      %s377 = ssub.s32 %s15, 3
      %p378 = scmp.gt.s32.totalorder %s377, 0
      %s379 = scalar_select %p378, %s377, 0
      %p380 = scmp.lt.s32.totalorder %s379, 0
      %s381 = scalar_select %p380, %s379, 0
      %s382 = smul.u32 16, %s381
      %p383 = scmp.lt.s32.totalorder %s382, 15
      %s384 = scalar_select %p383, %s382, 15
      %s385 = smul.addr %s384, 4
      %s386 = scalar_lea.vmem %s3, %s385
      %s387 = ssub.s32 %s15, 3
      %p388 = scmp.gt.s32.totalorder %s387, 0
      %s389 = scalar_select %p388, %s387, 0
      %p390 = scmp.lt.s32.totalorder %s389, 0
      %s391 = scalar_select %p390, %s389, 0
      %s392 = smul.u32 16, %s391
      %p393 = scmp.lt.s32.totalorder %s15, 3
      %s394 = scalar_select %p393, %s15, 3
      %s395 = smul.addr %s394, 8
      %s396 = scalar_lea.vmem %s4, %s395
      %p397 = scmp.ge.s32.totalorder %s15, 0
      %p398 = scmp.lt.s32.totalorder %s15, 1
      %p399 = pnand %p397, %p398
      %p400 = pneg %p399
      // Predicated region
      $region37: #{_wavelet_loss_fused.1} parent=35 // pred_check
        _
      $region38: #{_wavelet_loss_fused.1} parent=35 // pred_check_branch
        %402 = sbr.rel (%p399) target = $region40
      $region39: #{_wavelet_loss_fused.1} parent=35 // pred_region
        %v403 = vld [vmem:[%s339] sm:$0xff]
        %v404 = vld [vmem:[%s339 + $0x8] sm:$0xff]
        %v405 = vld [vmem:[%s339 + $0x10] sm:$0xff]
        %v406 = vld [vmem:[%s339 + $0x18] sm:$0xff]
        %vm407 = vcmask 39936
        %v408 = vsel %vm407, %v403, 0.0
        %409 = vadd.xlane.f32.xlu0 %v408
        %v410 = vpop.xlane.xlu0 %409
        %v411 = vsel %vm407, %v404, 0.0
        %412 = vadd.xlane.f32.xlu0 %v411
        %v413 = vpop.xlane.xlu0 %412
        %v414 = vsel %vm407, %v405, 0.0
        %415 = vadd.xlane.f32.xlu0 %v414
        %v416 = vpop.xlane.xlu0 %415
        %v417 = vsel %vm407, %v406, 0.0
        %418 = vadd.xlane.f32.xlu0 %v417
        %v419 = vpop.xlane.xlu0 %418
        %v420 = vmul.f32 %v410, %v410
        %v421 = vmul.f32 %v413, %v413
        %v422 = vmul.f32 %v416, %v416
        %v423 = vmul.f32 %v419, %v419
        %v424 = vadd.f32 %v420, %v421
        %v425 = vadd.f32 %v424, %v422
        %v426 = vadd.f32 %v425, %v423
        %v427 = vrot.slane %v426, 4
        %v428 = vadd.f32 %v426, %v427
        %v429 = vrot.slane %v428, 2
        %v430 = vadd.f32 %v428, %v429
        %v431 = vrot.slane %v430, 1
        %v432 = vadd.f32 %v430, %v431
        %v433 = vmul.f32 %v432, 0.03125
        %434 = vst [vmem:[%s396] sm:$0xff] %v433
      $region40: #{_wavelet_loss_fused.1} parent=35 // pred_fallthru
        _
      %p435 = scmp.ge.s32.totalorder %s15, 1
      %p436 = scmp.lt.s32.totalorder %s15, 2
      %p437 = pnand %p435, %p436
      %p438 = pneg %p437
      // Predicated region
      $region41: #{_wavelet_loss_fused.1} parent=35 // pred_check
        _
      $region42: #{_wavelet_loss_fused.1} parent=35 // pred_check_branch
        %440 = sbr.rel (%p437) target = $region44
      $region43: #{_wavelet_loss_fused.1} parent=35 // pred_region
        %v441 = vld [vmem:[%s354] sm:$0xff]
        %v442 = vld [vmem:[%s354 + $0x8] sm:$0xff]
        %v443 = vld [vmem:[%s354 + $0x10] sm:$0xff]
        %v444 = vld [vmem:[%s354 + $0x18] sm:$0xff]
        %v445 = vld [vmem:[%s354 + $0x20] sm:$0xff]
        %v446 = vld [vmem:[%s354 + $0x28] sm:$0xff]
        %v447 = vld [vmem:[%s354 + $0x30] sm:$0xff]
        %v448 = vld [vmem:[%s354 + $0x38] sm:$0xff]
        %v449 = vld [vmem:[%s354 + $0x40] sm:$0xff]
        %v450 = vld [vmem:[%s354 + $0x48] sm:$0xff]
        %v451 = vld [vmem:[%s354 + $0x50] sm:$0xff]
        %v452 = vld [vmem:[%s354 + $0x58] sm:$0xff]
        %v453 = vld [vmem:[%s354 + $0x60] sm:$0xff]
        %v454 = vld [vmem:[%s354 + $0x68] sm:$0xff]
        %v455 = vld [vmem:[%s354 + $0x70] sm:$0xff]
        %v456 = vld [vmem:[%s354 + $0x78] sm:$0xff]
        %vm457 = vcmask 72704
        %v458 = vsel %vm457, %v441, 0.0
        %459 = vadd.xlane.f32.xlu0 %v458
        %v460 = vpop.xlane.xlu0 %459
        %v461 = vsel %vm457, %v442, 0.0
        %462 = vadd.xlane.f32.xlu0 %v461
        %v463 = vpop.xlane.xlu0 %462
        %v464 = vsel %vm457, %v443, 0.0
        %465 = vadd.xlane.f32.xlu0 %v464
        %v466 = vpop.xlane.xlu0 %465
        %v467 = vsel %vm457, %v444, 0.0
        %468 = vadd.xlane.f32.xlu0 %v467
        %v469 = vpop.xlane.xlu0 %468
        %v470 = vsel %vm457, %v445, 0.0
        %471 = vadd.xlane.f32.xlu0 %v470
        %v472 = vpop.xlane.xlu0 %471
        %v473 = vsel %vm457, %v446, 0.0
        %474 = vadd.xlane.f32.xlu0 %v473
        %v475 = vpop.xlane.xlu0 %474
        %v476 = vsel %vm457, %v447, 0.0
        %477 = vadd.xlane.f32.xlu0 %v476
        %v478 = vpop.xlane.xlu0 %477
        %v479 = vsel %vm457, %v448, 0.0
        %480 = vadd.xlane.f32.xlu0 %v479
        %v481 = vpop.xlane.xlu0 %480
        %v482 = vsel %vm457, %v449, 0.0
        %483 = vadd.xlane.f32.xlu0 %v482
        %v484 = vpop.xlane.xlu0 %483
        %v485 = vsel %vm457, %v450, 0.0
        %486 = vadd.xlane.f32.xlu0 %v485
        %v487 = vpop.xlane.xlu0 %486
        %v488 = vsel %vm457, %v451, 0.0
        %489 = vadd.xlane.f32.xlu0 %v488
        %v490 = vpop.xlane.xlu0 %489
        %v491 = vsel %vm457, %v452, 0.0
        %492 = vadd.xlane.f32.xlu0 %v491
        %v493 = vpop.xlane.xlu0 %492
        %v494 = vsel %vm457, %v453, 0.0
        %495 = vadd.xlane.f32.xlu0 %v494
        %v496 = vpop.xlane.xlu0 %495
        %v497 = vsel %vm457, %v454, 0.0
        %498 = vadd.xlane.f32.xlu0 %v497
        %v499 = vpop.xlane.xlu0 %498
        %v500 = vsel %vm457, %v455, 0.0
        %501 = vadd.xlane.f32.xlu0 %v500
        %v502 = vpop.xlane.xlu0 %501
        %v503 = vsel %vm457, %v456, 0.0
        %504 = vadd.xlane.f32.xlu0 %v503
        %v505 = vpop.xlane.xlu0 %504
        %v506 = vmul.f32 %v460, %v460
        %v507 = vmul.f32 %v463, %v463
        %v508 = vmul.f32 %v466, %v466
        %v509 = vmul.f32 %v469, %v469
        %v510 = vmul.f32 %v472, %v472
        %v511 = vmul.f32 %v475, %v475
        %v512 = vmul.f32 %v478, %v478
        %v513 = vmul.f32 %v481, %v481
        %v514 = vmul.f32 %v484, %v484
        %v515 = vmul.f32 %v487, %v487
        %v516 = vmul.f32 %v490, %v490
        %v517 = vmul.f32 %v493, %v493
        %v518 = vmul.f32 %v496, %v496
        %v519 = vmul.f32 %v499, %v499
        %v520 = vmul.f32 %v502, %v502
        %v521 = vmul.f32 %v505, %v505
        %v522 = vadd.f32 %v506, %v507
        %v523 = vadd.f32 %v522, %v508
        %v524 = vadd.f32 %v523, %v509
        %v525 = vadd.f32 %v524, %v510
        %v526 = vadd.f32 %v525, %v511
        %v527 = vadd.f32 %v526, %v512
        %v528 = vadd.f32 %v527, %v513
        %v529 = vadd.f32 %v528, %v514
        %v530 = vadd.f32 %v529, %v515
        %v531 = vadd.f32 %v530, %v516
        %v532 = vadd.f32 %v531, %v517
        %v533 = vadd.f32 %v532, %v518
        %v534 = vadd.f32 %v533, %v519
        %v535 = vadd.f32 %v534, %v520
        %v536 = vadd.f32 %v535, %v521
        %v537 = vrot.slane %v536, 4
        %v538 = vadd.f32 %v536, %v537
        %v539 = vrot.slane %v538, 2
        %v540 = vadd.f32 %v538, %v539
        %v541 = vrot.slane %v540, 1
        %v542 = vadd.f32 %v540, %v541
        %v543 = vmul.f32 %v542, 0.0078125
        %544 = vst [vmem:[%s396] sm:$0xff] %v543
      $region44: #{_wavelet_loss_fused.1} parent=35 // pred_fallthru
        _
      %p545 = scmp.ge.s32.totalorder %s15, 2
      %p546 = scmp.lt.s32.totalorder %s15, 3
      %p547 = pnand %p545, %p546
      %p548 = pneg %p547
      // Predicated region
      $region45: #{_wavelet_loss_fused.1} parent=35 // pred_check
        _
      $region46: #{_wavelet_loss_fused.1} parent=35 // pred_check_branch
        %550 = sbr.rel (%p547) target = $region48
      $region47: #{_wavelet_loss_fused.1} parent=35 // pred_region
        %v551 = vld [vmem:[%s370] sm:$0xff]
        %v552 = vld [vmem:[%s370 + $0x8] sm:$0xff]
        %v553 = vld [vmem:[%s370 + $0x10] sm:$0xff]
        %v554 = vld [vmem:[%s370 + $0x18] sm:$0xff]
        %v555 = vld [vmem:[%s370 + $0x20] sm:$0xff]
        %v556 = vld [vmem:[%s370 + $0x28] sm:$0xff]
        %v557 = vld [vmem:[%s370 + $0x30] sm:$0xff]
        %v558 = vld [vmem:[%s370 + $0x38] sm:$0xff]
        %vm559 = vcmask 121856
        %v560 = vsel %vm559, %v551, 0.0
        %561 = vadd.xlane.f32.xlu0 %v560
        %v562 = vpop.xlane.xlu0 %561
        %v563 = vsel %vm559, %v552, 0.0
        %564 = vadd.xlane.f32.xlu0 %v563
        %v565 = vpop.xlane.xlu0 %564
        %v566 = vsel %vm559, %v553, 0.0
        %567 = vadd.xlane.f32.xlu0 %v566
        %v568 = vpop.xlane.xlu0 %567
        %v569 = vsel %vm559, %v554, 0.0
        %570 = vadd.xlane.f32.xlu0 %v569
        %v571 = vpop.xlane.xlu0 %570
        %v572 = vsel %vm559, %v555, 0.0
        %573 = vadd.xlane.f32.xlu0 %v572
        %v574 = vpop.xlane.xlu0 %573
        %v575 = vsel %vm559, %v556, 0.0
        %576 = vadd.xlane.f32.xlu0 %v575
        %v577 = vpop.xlane.xlu0 %576
        %v578 = vsel %vm559, %v557, 0.0
        %579 = vadd.xlane.f32.xlu0 %v578
        %v580 = vpop.xlane.xlu0 %579
        %v581 = vsel %vm559, %v558, 0.0
        %582 = vadd.xlane.f32.xlu0 %v581
        %v583 = vpop.xlane.xlu0 %582
        %v584 = vmul.f32 %v562, %v562
        %v585 = vmul.f32 %v565, %v565
        %v586 = vmul.f32 %v568, %v568
        %v587 = vmul.f32 %v571, %v571
        %v588 = vmul.f32 %v574, %v574
        %v589 = vmul.f32 %v577, %v577
        %v590 = vmul.f32 %v580, %v580
        %v591 = vmul.f32 %v583, %v583
        %v592 = vadd.f32 %v584, %v585
        %v593 = vadd.f32 %v592, %v586
        %v594 = vadd.f32 %v593, %v587
        %v595 = vadd.f32 %v594, %v588
        %v596 = vadd.f32 %v595, %v589
        %v597 = vadd.f32 %v596, %v590
        %v598 = vadd.f32 %v597, %v591
        %v599 = vrot.slane %v598, 4
        %v600 = vadd.f32 %v598, %v599
        %v601 = vrot.slane %v600, 2
        %v602 = vadd.f32 %v600, %v601
        %v603 = vrot.slane %v602, 1
        %v604 = vadd.f32 %v602, %v603
        %v605 = vmul.f32 %v604, 0.015625
        %606 = vst [vmem:[%s396] sm:$0xff] %v605
      $region48: #{_wavelet_loss_fused.1} parent=35 // pred_fallthru
        _
      %p607 = scmp.ge.s32.totalorder %s15, 3
      %p608 = scmp.lt.s32.totalorder %s15, 4
      %p609 = pnand %p607, %p608
      %p610 = pneg %p609
      // Predicated region
      $region49: #{_wavelet_loss_fused.1} parent=35 // pred_check
        _
      $region50: #{_wavelet_loss_fused.1} parent=35 // pred_check_branch
        %612 = sbr.rel (%p609) target = $region52
      $region51: #{_wavelet_loss_fused.1} parent=35 // pred_region
        %v613 = vld [vmem:[%s386] sm:$0xf]
        %v614 = vld [vmem:[%s386 + $0x4] sm:$0xf]
        %v615 = vld [vmem:[%s386 + $0x8] sm:$0xf]
        %v616 = vld [vmem:[%s386 + $0xc] sm:$0xf]
        %v617 = vld [vmem:[%s386 + $0x10] sm:$0xf]
        %v618 = vld [vmem:[%s386 + $0x14] sm:$0xf]
        %v619 = vld [vmem:[%s386 + $0x18] sm:$0xf]
        %v620 = vld [vmem:[%s386 + $0x1c] sm:$0xf]
        %v621 = vld [vmem:[%s386 + $0x20] sm:$0xf]
        %v622 = vld [vmem:[%s386 + $0x24] sm:$0xf]
        %v623 = vld [vmem:[%s386 + $0x28] sm:$0xf]
        %v624 = vld [vmem:[%s386 + $0x2c] sm:$0xf]
        %v625 = vld [vmem:[%s386 + $0x30] sm:$0xf]
        %v626 = vld [vmem:[%s386 + $0x34] sm:$0xf]
        %v627 = vld [vmem:[%s386 + $0x38] sm:$0xf]
        %v628 = vld [vmem:[%s386 + $0x3c] sm:$0xf]
        %v629 = vunpack.c.l.bf16 %v613
        %v630 = vunpack.c.l.bf16 %v614
        %v631 = vunpack.c.l.bf16 %v615
        %v632 = vunpack.c.l.bf16 %v616
        %v633 = vunpack.c.l.bf16 %v617
        %v634 = vunpack.c.l.bf16 %v618
        %v635 = vunpack.c.l.bf16 %v619
        %v636 = vunpack.c.l.bf16 %v620
        %v637 = vunpack.c.l.bf16 %v621
        %v638 = vunpack.c.l.bf16 %v622
        %v639 = vunpack.c.l.bf16 %v623
        %v640 = vunpack.c.l.bf16 %v624
        %v641 = vunpack.c.l.bf16 %v625
        %v642 = vunpack.c.l.bf16 %v626
        %v643 = vunpack.c.l.bf16 %v627
        %v644 = vunpack.c.l.bf16 %v628
        %vm645 = vcmask 220160
        %v646 = vsel %vm645, %v629, 0.0
        %647 = vadd.xlane.f32.xlu0 %v646
        %v648 = vpop.xlane.xlu0 %647
        %v649 = vsel %vm645, %v630, 0.0
        %650 = vadd.xlane.f32.xlu0 %v649
        %v651 = vpop.xlane.xlu0 %650
        %v652 = vsel %vm645, %v631, 0.0
        %653 = vadd.xlane.f32.xlu0 %v652
        %v654 = vpop.xlane.xlu0 %653
        %v655 = vsel %vm645, %v632, 0.0
        %656 = vadd.xlane.f32.xlu0 %v655
        %v657 = vpop.xlane.xlu0 %656
        %v658 = vsel %vm645, %v633, 0.0
        %659 = vadd.xlane.f32.xlu0 %v658
        %v660 = vpop.xlane.xlu0 %659
        %v661 = vsel %vm645, %v634, 0.0
        %662 = vadd.xlane.f32.xlu0 %v661
        %v663 = vpop.xlane.xlu0 %662
        %v664 = vsel %vm645, %v635, 0.0
        %665 = vadd.xlane.f32.xlu0 %v664
        %v666 = vpop.xlane.xlu0 %665
        %v667 = vsel %vm645, %v636, 0.0
        %668 = vadd.xlane.f32.xlu0 %v667
        %v669 = vpop.xlane.xlu0 %668
        %v670 = vsel %vm645, %v637, 0.0
        %671 = vadd.xlane.f32.xlu0 %v670
        %v672 = vpop.xlane.xlu0 %671
        %v673 = vsel %vm645, %v638, 0.0
        %674 = vadd.xlane.f32.xlu0 %v673
        %v675 = vpop.xlane.xlu0 %674
        %v676 = vsel %vm645, %v639, 0.0
        %677 = vadd.xlane.f32.xlu0 %v676
        %v678 = vpop.xlane.xlu0 %677
        %v679 = vsel %vm645, %v640, 0.0
        %680 = vadd.xlane.f32.xlu0 %v679
        %v681 = vpop.xlane.xlu0 %680
        %v682 = vsel %vm645, %v641, 0.0
        %683 = vadd.xlane.f32.xlu0 %v682
        %v684 = vpop.xlane.xlu0 %683
        %v685 = vsel %vm645, %v642, 0.0
        %686 = vadd.xlane.f32.xlu0 %v685
        %v687 = vpop.xlane.xlu0 %686
        %v688 = vsel %vm645, %v643, 0.0
        %689 = vadd.xlane.f32.xlu0 %v688
        %v690 = vpop.xlane.xlu0 %689
        %v691 = vsel %vm645, %v644, 0.0
        %692 = vadd.xlane.f32.xlu0 %v691
        %v693 = vpop.xlane.xlu0 %692
        %v694 = vmul.f32 %v648, %v648
        %v695 = vmul.f32 %v651, %v651
        %v696 = vmul.f32 %v654, %v654
        %v697 = vmul.f32 %v657, %v657
        %v698 = vmul.f32 %v660, %v660
        %v699 = vmul.f32 %v663, %v663
        %v700 = vmul.f32 %v666, %v666
        %v701 = vmul.f32 %v669, %v669
        %v702 = vmul.f32 %v672, %v672
        %v703 = vmul.f32 %v675, %v675
        %v704 = vmul.f32 %v678, %v678
        %v705 = vmul.f32 %v681, %v681
        %v706 = vmul.f32 %v684, %v684
        %v707 = vmul.f32 %v687, %v687
        %v708 = vmul.f32 %v690, %v690
        %v709 = vmul.f32 %v693, %v693
        %v710 = vadd.f32 %v694, %v695
        %v711 = vadd.f32 %v710, %v696
        %v712 = vadd.f32 %v711, %v697
        %v713 = vadd.f32 %v712, %v698
        %v714 = vadd.f32 %v713, %v699
        %v715 = vadd.f32 %v714, %v700
        %v716 = vadd.f32 %v715, %v701
        %v717 = vadd.f32 %v716, %v702
        %v718 = vadd.f32 %v717, %v703
        %v719 = vadd.f32 %v718, %v704
        %v720 = vadd.f32 %v719, %v705
        %v721 = vadd.f32 %v720, %v706
        %v722 = vadd.f32 %v721, %v707
        %v723 = vadd.f32 %v722, %v708
        %v724 = vadd.f32 %v723, %v709
        %v725 = vrot.slane %v724, 4
        %v726 = vadd.f32 %v724, %v725
        %v727 = vrot.slane %v726, 2
        %v728 = vadd.f32 %v726, %v727
        %v729 = vrot.slane %v728, 1
        %v730 = vadd.f32 %v728, %v729
        %v731 = vmul.f32 %v730, 0.0078125
        %732 = vst [vmem:[%s396] sm:$0xff] %v731
      $region52: #{_wavelet_loss_fused.1} parent=35 // pred_fallthru
        _
      %p733 = scmp.lt.s32.totalorder %s15, 3
      %s734 = scalar_select %p733, %s15, 3
      %s735 = smul.addr %s734, 8
      %s736 = scalar_lea.vmem %s4, %s735
      // Predicated region
      $region53: #{_wavelet_loss_fused.1} parent=35 // pred_check
        %p737 = pneg %p175
      $region54: #{_wavelet_loss_fused.1} parent=35 // pred_check_branch
        %739 = sbr.rel (%p737) target = $region56
      $region55: #{_wavelet_loss_fused.1} parent=35 // pred_region
        _
      $region56: #{_wavelet_loss_fused.1} parent=35 // pred_fallthru
        _
    $region36: #{_wavelet_loss_fused.1} parent=5 // pred_fallthru
      _
    %p740 = scmp.le.s32.totalorder 2, %s10
    // Predicated region
    $region57: #{_wavelet_loss_fused.1} parent=5 // pred_check
      %p741 = pneg %p740
    $region58: #{_wavelet_loss_fused.1} parent=5 // pred_check_branch
      %743 = sbr.rel (%p741) target = $region60
    $region59: #{_wavelet_loss_fused.1} parent=5 // pred_region
      %s744 = ssub.s32 %s10, 2
      // Predicated region
      $region61: #{_wavelet_loss_fused.1} parent=59 // pred_check
        %p745 = pneg %p181
      $region62: #{_wavelet_loss_fused.1} parent=59 // pred_check_branch
        %747 = sbr.rel (%p745) target = $region64
      $region63: #{_wavelet_loss_fused.1} parent=59 // pred_region
        %p748 = scmp.lt.s32.totalorder %s16, 3
        %s749 = scalar_select %p748, %s16, 3
        %s750 = smul.addr %s749, 8
        %s751 = scalar_lea.vmem %s4, %s750
      $region64: #{_wavelet_loss_fused.1} parent=59 // pred_fallthru
        _
    $region60: #{_wavelet_loss_fused.1} parent=5 // pred_fallthru
      _
  $region6: #{_wavelet_loss_fused.1} parent=0 // loop_footer
    %s14 = sadd.s32 1, %s10
  $region7: #{_wavelet_loss_fused.1} parent=0 // loop_footer_branch
    %9 = sbr.rel target = $region3
  $region8: #{_wavelet_loss_fused.1} parent=0 // loop_exit
    _

</llo_original>
